<compile_context>
chip_gen: v7x
topology: tpu7x:2x2x1
jax: 0.10.0
libtpu: 0.0.40
codegen_flags: <defaults>
</compile_context>

<pallas_src>
import functools
import math

import jax
import jax.numpy as jnp
from jax import lax
from jax.experimental import pallas as pl
from jax.experimental.pallas import tpu as pltpu


# ------------------------------- helpers ------------------------------------

def _fit_tile(dim, cap, mults=(256, 128, 8)):
    """Largest tile <= cap dividing `dim`, preferring larger alignment multiples.

    Falls back to the full dimension (always a legal Pallas block); callers
    guard that case by setting vmem_limit_bytes from the real block sizes.
    """
    if dim <= cap:
        return dim
    for mult in mults:
        t = (cap // mult) * mult
        while t >= mult:
            if dim % t == 0:
                return t
            t -= mult
    return dim


def _chip_budget():
    """(matmul tile cap, SDPA tq cap, vmem ceiling).

    Conservative for v7x (64 MiB physical VMEM); bumped on 128 MiB parts
    (v5e/v6e) where bigger tiles cut HBM re-reads and per-step overhead.
    """
    mm_cap, tq_cap, vmem_ceiling = 512, 256, 64 * 1024 * 1024
    try:
        info = pltpu.get_tpu_info()
        if getattr(info, "vmem_capacity_bytes", 0) >= 128 * 1024 * 1024:
            mm_cap, tq_cap, vmem_ceiling = 1024, 512, 100 * 1024 * 1024
    except Exception:
        pass
    return mm_cap, tq_cap, vmem_ceiling


def _compiler_params(dim_sem, est_bytes, vmem_ceiling):
    vmem_limit = int(min(vmem_ceiling, max(32 * 1024 * 1024,
                                           int(1.25 * est_bytes))))
    return pltpu.CompilerParams(dimension_semantics=dim_sem,
                                vmem_limit_bytes=vmem_limit)


# --------------------------- tiled matmul kernel ------------------------------

def _matmul_kernel(x_ref, w_ref, o_ref, acc_ref):
    k = pl.program_id(2)

    @pl.when(k == 0)
    def _init():
        acc_ref[...] = jnp.zeros_like(acc_ref)

    acc_ref[...] += jnp.dot(x_ref[...], w_ref[...],
                            preferred_element_type=jnp.float32)

    @pl.when(k == pl.num_programs(2) - 1)
    def _finalize():
        o_ref[...] = acc_ref[...].astype(o_ref.dtype)


def pallas_matmul(x2d, w):
    """Tiled (M,K)@(K,N) with bf16 operands and a float32 VMEM accumulator."""
    M, K = x2d.shape
    Kw, N = w.shape
    assert K == Kw
    mm_cap, _, vmem_ceiling = _chip_budget()

    tm = _fit_tile(M, mm_cap, mults=(256, 16, 8))
    tn = _fit_tile(N, mm_cap, mults=(256, 128, 8))
    tk = _fit_tile(K, mm_cap, mults=(256, 128, 8))
    # Keep both v7x TensorCores fed on tiny-M projection GEMMs.
    if (M // tm) * (N // tn) == 1 and tn % 256 == 0:
        tn //= 2
    grid = (M // tm, N // tn, K // tk)

    isz = jnp.dtype(x2d.dtype).itemsize
    wsz = jnp.dtype(w.dtype).itemsize
    est = (2 * (tm * tk * isz + tk * tn * wsz + tm * tn * isz)
           + tm * tn * 4)

    return pl.pallas_call(
        _matmul_kernel,
        out_shape=jax.ShapeDtypeStruct((M, N), x2d.dtype),
        grid=grid,
        in_specs=[pl.BlockSpec((tm, tk), lambda i, j, k: (i, k)),
                  pl.BlockSpec((tk, tn), lambda i, j, k: (k, j))],
        out_specs=pl.BlockSpec((tm, tn), lambda i, j, k: (i, j)),
        scratch_shapes=[pltpu.VMEM((tm, tn), jnp.float32)],
        compiler_params=_compiler_params(
            ("parallel", "parallel", "arbitrary"), est, vmem_ceiling),
    )(x2d, w)


# ---------------- flash attention + fused output projection -------------------

def _flash_attn_outproj_kernel(q_ref, k_ref, v_ref, wo_ref, bo_ref, o_ref,
                               m_ref, l_ref, acc_ref, *, num_heads, head_dim):
    H, Dh = num_heads, head_dim
    ki = pl.program_id(2)

    @pl.when(ki == 0)
    def _init():
        m_ref[...] = jnp.full_like(m_ref, -jnp.inf)
        l_ref[...] = jnp.zeros_like(l_ref)
        acc_ref[...] = jnp.zeros_like(acc_ref)

    # Static unroll over heads: per-head slices are *static* lane slices of the
    # (tq, H*Dh) VMEM blocks, so no 'b n (h d) -> b h n d' transpose ever hits HBM.
    # TODO(synk): for H >= 8 audit vld/vst slot pressure; if saturated, move
    # head-pairs (lane block 2*Dh) onto a 4th grid axis instead of the unroll.
    for h in range(H):
        sl = slice(h * Dh, (h + 1) * Dh)
        qh = q_ref[0, :, sl]            # bf16; 1/sqrt(Dh) folded into w_q offline
        kh = k_ref[0, :, sl]
        vh = v_ref[0, :, sl]
        # bf16 operands, f32 accumulation on the MXU.
        s = lax.dot_general(qh, kh, (((1,), (1,)), ((), ())),
                            preferred_element_type=jnp.float32)   # (tq, tk)
        m_prev = m_ref[h]                                          # (tq, 1)
        m_new = jnp.maximum(m_prev, jnp.max(s, axis=-1, keepdims=True))
        alpha = jnp.exp(m_prev - m_new)
        p = jnp.exp(s - m_new)
        l_ref[h] = alpha * l_ref[h] + jnp.sum(p, axis=-1, keepdims=True)
        acc_ref[h] = alpha * acc_ref[h] + jnp.dot(
            p.astype(vh.dtype), vh, preferred_element_type=jnp.float32)
        m_ref[h] = m_new

    @pl.when(ki == pl.num_programs(2) - 1)
    def _finalize():
        # Normalize, then fused output projection (+ bias): one extra MXU dot in
        # the epilogue instead of a whole (B, Nq, inner) HBM round trip.
        outs = [acc_ref[h] * pl.reciprocal(l_ref[h], approx=False)
                for h in range(H)]
        attn = jnp.concatenate(outs, axis=-1).astype(wo_ref.dtype)  # (tq, H*Dh)
        out = jnp.dot(attn, wo_ref[...], preferred_element_type=jnp.float32)
        out = out + bo_ref[...].astype(jnp.float32)
        o_ref[0, :, :] = out.astype(o_ref.dtype)


def pallas_sdpa_outproj(q_src, q_off, kv_src, k_off, v_off, w_out, b_out, *,
                        num_heads, head_dim, out_dtype, tk_cap=512):
    """Flash-style SDPA over fused projection outputs, with fused out-projection.

    q_src:  (B, Nq, Cq)  — queries live at lane-block offset q_off * inner.
    kv_src: (B, Nk, Ckv) — keys at k_off * inner, values at v_off * inner.
    Returns (B, Nq, query_dim) == SDPA output already passed through to_out.
    """
    H, Dh = num_heads, head_dim
    inner = H * Dh
    B, Nq, _ = q_src.shape
    _, Nk, _ = kv_src.shape
    Qd = w_out.shape[1]
    mm_cap, tq_cap, vmem_ceiling = _chip_budget()

    def _maybe_split(src, off):
        # The fused lane-slice trick needs block width `inner` to be a legal TPU
        # block (multiple of 128 or the full last dim); otherwise fall back to a
        # contiguous XLA slice.
        if src.shape[-1] == inner:
            return src, 0
        if inner % 128 == 0:
            return src, off
        return src[..., off * inner:(off + 1) * inner], 0

    q_arr, q_off = _maybe_split(q_src, q_off)
    k_arr, k_off = _maybe_split(kv_src, k_off)
    v_arr, v_off = _maybe_split(kv_src, v_off)

    tq = _fit_tile(Nq, tq_cap, mults=(256, 128, 16, 8))
    tk = _fit_tile(Nk, tk_cap, mults=(256, 128, 8))
    # Keep both v7x TensorCores fed when B==1 and Nq fits a single tile.
    if B * (Nq // tq) == 1 and tq % 16 == 0:
        tq //= 2
    grid = (B, Nq // tq, Nk // tk)

    b2d = b_out.reshape(1, Qd)
    osz = jnp.dtype(out_dtype).itemsize
    est = (2 * (tq * inner + 2 * tk * inner) * 2        # bf16 q, k, v blocks
           + 2 * (inner * Qd * 2 + Qd * 4)              # resident w_out / b_out
           + 2 * tq * Qd * osz                          # output blocks
           + H * tq * (2 * 128 + Dh) * 4)               # m/l (lane-padded) + acc

    kernel = functools.partial(_flash_attn_outproj_kernel,
                               num_heads=H, head_dim=Dh)
    return pl.pallas_call(
        kernel,
        out_shape=jax.ShapeDtypeStruct((B, Nq, Qd), out_dtype),
        grid=grid,
        in_specs=[
            pl.BlockSpec((1, tq, inner), lambda b, qi, ki: (b, qi, q_off)),
            pl.BlockSpec((1, tk, inner), lambda b, qi, ki: (b, ki, k_off)),
            pl.BlockSpec((1, tk, inner), lambda b, qi, ki: (b, ki, v_off)),
            pl.BlockSpec((inner, Qd), lambda b, qi, ki: (0, 0)),   # resident w_out
            pl.BlockSpec((1, Qd), lambda b, qi, ki: (0, 0)),       # resident b_out
        ],
        out_specs=pl.BlockSpec((1, tq, Qd), lambda b, qi, ki: (b, qi, 0)),
        scratch_shapes=[
            pltpu.VMEM((H, tq, 1), jnp.float32),    # running max
            pltpu.VMEM((H, tq, 1), jnp.float32),    # running sum
            pltpu.VMEM((H, tq, Dh), jnp.float32),   # f32 output accumulator
        ],
        compiler_params=_compiler_params(
            ("parallel", "parallel", "arbitrary"), est, vmem_ceiling),
    )(q_arr, k_arr, v_arr, w_out, b2d)


# ----------------------------- module wrapper --------------------------------

class BasicAttentionPallas:
    """Pallas-TPU forward of the PyTorch BasicAttention module (inference)."""

    def __init__(self, query_dim, context_dim=None, head_dim=64, num_heads=8,
                 dropout=0.0, key=None):
        inner_dim = head_dim * num_heads
        context_dim = query_dim if context_dim is None else context_dim
        self.num_heads = num_heads
        self.head_dim = head_dim
        self.inner_dim = inner_dim
        self.query_dim = query_dim
        self.context_dim = context_dim

        if key is None:
            key = jax.random.PRNGKey(0)
        kq, kk, kv, ko, kb = jax.random.split(key, 5)

        # torch.nn.Linear convention y = x @ W.T + b; weights stored already
        # transposed as (in_dim, out_dim).
        def init(k, fan_in, fan_out):
            bound = 1.0 / math.sqrt(fan_in)
            return jax.random.uniform(k, (fan_in, fan_out), jnp.float32,
                                      minval=-bound, maxval=bound)

        # f32 masters (used by the pure-JAX reference).
        self.w_q_f32 = init(kq, query_dim, inner_dim)
        self.w_k_f32 = init(kk, context_dim, inner_dim)
        self.w_v_f32 = init(kv, context_dim, inner_dim)
        self.w_out_f32 = init(ko, inner_dim, query_dim)
        bound = 1.0 / math.sqrt(inner_dim)
        self.b_out = jax.random.uniform(kb, (query_dim,), jnp.float32,
                                        minval=-bound, maxval=bound)

        # Kernel weights: bf16 MXU operands; 1/sqrt(Dh) folded into w_q so the
        # resident q tile never needs an in-kernel rescale.
        scale = 1.0 / math.sqrt(head_dim)
        self.w_q = (self.w_q_f32 * scale).astype(jnp.bfloat16)
        self.w_k = self.w_k_f32.astype(jnp.bfloat16)
        self.w_v = self.w_v_f32.astype(jnp.bfloat16)
        self.w_out = self.w_out_f32.astype(jnp.bfloat16)

        # Fused projection weights so activations stream from HBM once.
        self.w_kv = jnp.concatenate([self.w_k, self.w_v], axis=1)
        self.w_qkv = (jnp.concatenate([self.w_q, self.w_k, self.w_v], axis=1)
                      if context_dim == query_dim else None)
        # TODO(synk): Dropout(p=dropout) in to_out is the identity at inference
        # (p=0.0); training-mode dropout is not implemented.

    def __call__(self, x, context=None):
        B, Nq, _ = x.shape
        H, Dh, inner = self.num_heads, self.head_dim, self.inner_dim
        out_dtype = x.dtype
        xb = x.astype(jnp.bfloat16)

        if context is None and self.w_qkv is not None:
            # Self-attention: one fused QKV projection (single pass over x);
            # the SDPA BlockSpecs slice q/k/v out of the fused result directly.
            qkv = pallas_matmul(xb.reshape(B * Nq, -1), self.w_qkv)
            qkv = qkv.reshape(B, Nq, 3 * inner)
            out = pallas_sdpa_outproj(qkv, 0, qkv, 1, 2, self.w_out, self.b_out,
                                      num_heads=H, head_dim=Dh,
                                      out_dtype=out_dtype)
        else:
            ctx = x if context is None else context
            ctxb = ctx.astype(jnp.bfloat16)
            Nk = ctx.shape[1]
            q = pallas_matmul(xb.reshape(B * Nq, -1), self.w_q)
            q = q.reshape(B, Nq, inner)
            kv = pallas_matmul(ctxb.reshape(B * Nk, -1), self.w_kv)
            kv = kv.reshape(B, Nk, 2 * inner)
            out = pallas_sdpa_outproj(q, 0, kv, 0, 1, self.w_out, self.b_out,
                                      num_heads=H, head_dim=Dh,
                                      out_dtype=out_dtype)
        # Output projection (+ bias) is already fused into the SDPA epilogue.
        return out


# --------------------------- pure-JAX reference -------------------------------

def reference_forward(mod, x, context=None):
    """Full-f32 reference matching the PyTorch module semantics."""
    B, Nq, _ = x.shape
    ctx = x if context is None else context
    Nk = ctx.shape[1]
    H, Dh = mod.num_heads, mod.head_dim
    q = (x @ mod.w_q_f32).reshape(B, Nq, H, Dh).transpose(0, 2, 1, 3)
    k = (ctx @ mod.w_k_f32).reshape(B, Nk, H, Dh).transpose(0, 2, 1, 3)
    v = (ctx @ mod.w_v_f32).reshape(B, Nk, H, Dh).transpose(0, 2, 1, 3)
    s = jnp.einsum("bhqd,bhkd->bhqk", q, k) / math.sqrt(Dh)
    p = jax.nn.softmax(s, axis=-1)
    o = jnp.einsum("bhqk,bhkd->bhqd", p, v)
    o = o.transpose(0, 2, 1, 3).reshape(B, Nq, H * Dh)
    return o @ mod.w_out_f32 + mod.b_out


if __name__ == "__main__":
    key = jax.random.PRNGKey(0)
    kx, kc, kp1, kp2 = jax.random.split(key, 4)

    # Small but lane-dense shapes: inner_dim = 2*64 = 128 (multiple of 128), so
    # the fused lane-slicing BlockSpecs and unmasked full-lane stores are used.
    B, N, query_dim = 2, 16, 128
    num_heads, head_dim = 2, 64

    x = jax.random.normal(kx, (B, N, query_dim), jnp.float32)

    # --- self-attention (context=None): fused QKV + fused out-projection ---
    mod = BasicAttentionPallas(query_dim=query_dim, head_dim=head_dim,
                               num_heads=num_heads, dropout=0.0, key=kp1)
    out = jax.block_until_ready(mod(x))
    ref = reference_forward(mod, x)
    assert out.shape == (B, N, query_dim)
    err = float(jnp.max(jnp.abs(out - ref)))
    # Tolerance covers bf16 MXU operands (f32 accumulation) vs the f32 reference.
    assert jnp.allclose(out, ref, atol=5e-2, rtol=5e-2), f"self-attn max err {err}"

    # --- cross-attention: separate Q + fused KV path ---
    context_dim, Nk = 256, 24
    ctx = jax.random.normal(kc, (B, Nk, context_dim), jnp.float32)
    mod_x = BasicAttentionPallas(query_dim=query_dim, context_dim=context_dim,
                                 head_dim=head_dim, num_heads=num_heads,
                                 dropout=0.0, key=kp2)
    out_x = jax.block_until_ready(mod_x(x, ctx))
    ref_x = reference_forward(mod_x, x, ctx)
    assert out_x.shape == (B, N, query_dim)
    err_x = float(jnp.max(jnp.abs(out_x - ref_x)))
    assert jnp.allclose(out_x, ref_x, atol=5e-2, rtol=5e-2), f"cross-attn max err {err_x}"

    print("KERNEL_OK")
</pallas_src>

<mosaic_0001>
module attributes {stable_mosaic.version = 11 : i64} {
  func.func @_matmul_kernel(%arg0: i32, %arg1: i32, %arg2: i32, %arg3: memref<32x128xbf16, #tpu.memory_space<vmem>>, %arg4: memref<128x384xbf16, #tpu.memory_space<vmem>>, %arg5: memref<32x384xbf16, #tpu.memory_space<vmem>>, %arg6: memref<32x384xf32, #tpu.memory_space<vmem>>) attributes {dimension_semantics = [#tpu.dimension_semantics<parallel>, #tpu.dimension_semantics<parallel>, #tpu.dimension_semantics<arbitrary>], iteration_bounds = array<i64: 1, 1, 1>, scalar_prefetch = 0 : i64, scratch_operands = 1 : i64, tpu.core_type = #tpu.core_type<tc>, window_params = [{transform_indices = @transform_0, window_bounds = array<i64: 32, 128>}, {transform_indices = @transform_1, window_bounds = array<i64: 128, 384>}, {transform_indices = @transform_2, window_bounds = array<i64: 32, 384>}]} {
    %c0_i32 = arith.constant 0 : i32
    %0 = arith.cmpi eq, %arg2, %c0_i32 : i32
    %1 = arith.extui %0 : i1 to i32
    %c0_i32_0 = arith.constant 0 : i32
    %2 = arith.cmpi ne, %1, %c0_i32_0 : i32
    scf.if %2 {
      %cst_10 = arith.constant 0.000000e+00 : f32
      %12 = vector.broadcast %cst_10 : f32 to vector<32x384xf32>
      %c0_11 = arith.constant 0 : index
      %c0_12 = arith.constant 0 : index
      %13 = vector.load %arg6[%c0_11, %c0_12] : memref<32x384xf32, #tpu.memory_space<vmem>>, vector<32x384xf32>
      tpu.vector_store %arg6[%c0_11, %c0_12], %12 {strides = array<i32>} : memref<32x384xf32, #tpu.memory_space<vmem>>, vector<32x384xf32>,
    } else {
    }
    %c0 = arith.constant 0 : index
    %c0_1 = arith.constant 0 : index
    %3 = vector.load %arg6[%c0, %c0_1] : memref<32x384xf32, #tpu.memory_space<vmem>>, vector<32x384xf32>
    %c0_2 = arith.constant 0 : index
    %c0_3 = arith.constant 0 : index
    %4 = vector.load %arg3[%c0_2, %c0_3] : memref<32x128xbf16, #tpu.memory_space<vmem>>, vector<32x128xbf16>
    %c0_4 = arith.constant 0 : index
    %c0_5 = arith.constant 0 : index
    %5 = vector.load %arg4[%c0_4, %c0_5] : memref<128x384xbf16, #tpu.memory_space<vmem>>, vector<128x384xbf16>
    %cst = arith.constant dense<0.000000e+00> : vector<32x384xf32>
    %6 = tpu.matmul %4, %5, %cst {dimension_numbers = #tpu.dot_dimension_numbers<[1], [0], [0], [1], [0, 0, 1, 1], [], []>} : vector<32x128xbf16>, vector<128x384xbf16>, vector<32x384xf32> -> vector<32x384xf32>
    %7 = arith.addf %3, %6 : vector<32x384xf32>
    %c0_6 = arith.constant 0 : index
    %c0_7 = arith.constant 0 : index
    %8 = vector.load %arg6[%c0_6, %c0_7] : memref<32x384xf32, #tpu.memory_space<vmem>>, vector<32x384xf32>
    tpu.vector_store %arg6[%c0_6, %c0_7], %7 {strides = array<i32>} : memref<32x384xf32, #tpu.memory_space<vmem>>, vector<32x384xf32>,
    %c0_i32_8 = arith.constant 0 : i32
    %9 = arith.cmpi eq, %arg2, %c0_i32_8 : i32
    %10 = arith.extui %9 : i1 to i32
    %c0_i32_9 = arith.constant 0 : i32
    %11 = arith.cmpi ne, %10, %c0_i32_9 : i32
    scf.if %11 {
      %c0_10 = arith.constant 0 : index
      %c0_11 = arith.constant 0 : index
      %12 = vector.load %arg6[%c0_10, %c0_11] : memref<32x384xf32, #tpu.memory_space<vmem>>, vector<32x384xf32>
      %13 = arith.truncf %12 : vector<32x384xf32> to vector<32x384xbf16>
      %c0_12 = arith.constant 0 : index
      %c0_13 = arith.constant 0 : index
      %14 = vector.load %arg5[%c0_12, %c0_13] : memref<32x384xbf16, #tpu.memory_space<vmem>>, vector<32x384xbf16>
      tpu.vector_store %arg5[%c0_12, %c0_13], %13 {strides = array<i32>} : memref<32x384xbf16, #tpu.memory_space<vmem>>, vector<32x384xbf16>,
    } else {
    }
    return
  }
  func.func @transform_0(%arg0: i32, %arg1: i32, %arg2: i32) -> (i32, i32) {
    %c0_i32 = arith.constant 0 : i32
    return %arg0, %arg2 : i32, i32
  }
  func.func @transform_1(%arg0: i32, %arg1: i32, %arg2: i32) -> (i32, i32) {
    %c0_i32 = arith.constant 0 : i32
    return %arg2, %arg1 : i32, i32
  }
  func.func @transform_2(%arg0: i32, %arg1: i32, %arg2: i32) -> (i32, i32) {
    %c0_i32 = arith.constant 0 : i32
    return %arg0, %arg1 : i32, i32
  }
}

</mosaic_0001>

<llo_original>
// kernel: tpu_custom_call.1
$region0: #{tpu_custom_call.1}
  #allocation0 [shape = 'u32[]', space=smem, size = 0x4, offset = 0x4, fixed_abs, tag = 'smem constant byte address 0x4 - core index']
  #allocation1 [shape = 'u32[144,128]{1,0:T(1,128)}', space=vmem, size = 0x12000, scoped, tag = 'internal scratch']
  #allocation2 [shape = 'f32[32,384]{1,0:T(8,128)}', space=vmem, size = 0xc000, scoped, tag = 'scratch operand']
  %s0 = inlined_call_operand.hbm [shape: bf16[32,128], index: 0, kind: input, shape index: {}]
  %s1 = inlined_call_operand.hbm [shape: bf16[128,384], index: 1, kind: input, shape index: {}]
  %s2 = inlined_call_operand.hbm [shape: bf16[32,384], index: 2, kind: output, shape index: {}]
  %s3 = sld [smem:[#allocation0]]
  $region34: #{tpu_custom_call.1} parent=0
    _
  %s5 = ssub.s32 1, %s3
  %s6 = scalar_select 0, %s5, %s3
  $region1: #{tpu_custom_call.1} parent=0
    #allocation3 [shape = 'u8[8192]{0}', space=vmem, size = 0x2000, scoped, tag = 'input window, operand 0, single buffered']
    #allocation4 [shape = 's32[1]{0}', space=sflag, size = 0x4, scoped, tag = 'scoped memory for tpu_custom_call.1']
    #allocation5 [shape = 's32[1]{0}', space=sflag, size = 0x4, scoped, tag = 'scoped memory for tpu_custom_call.1']
    #allocation6 [shape = 'u8[98304]{0}', space=vmem, size = 0x18000, scoped, tag = 'input window, operand 1, single buffered']
    #allocation7 [shape = 's32[1]{0}', space=sflag, size = 0x4, scoped, tag = 'scoped memory for tpu_custom_call.1']
    #allocation8 [shape = 'u8[24576]{0}', space=vmem, size = 0x6000, scoped, tag = 'output window, operand 0, single buffered']
    %7 = vsyncpa [#allocation4], 0
    %8 = vsyncpa [#allocation7], 0
    %9 = vsyncpa [#allocation5], 0
    // Predicated region
    $region2: #{tpu_custom_call.1} parent=1 // pred_check
      _
    $region3: #{tpu_custom_call.1} parent=1 // pred_check_branch
      %11 = sbr.rel (0) target = $region5
    $region4: #{tpu_custom_call.1} parent=1 // pred_region
      %s13 = ssub.s32 256, 256
      %14 = vsyncadd [#allocation4], %s13
      %s15 = sshll.u32 [#allocation3], 4
      %s16 = int_to_ptr.vmem [resolvable:$true] %s15
      %21 = dma.hbm_to_vmem [thread:$0]  %s0, 256, %s16, [#allocation4], 64, 64, 4
    $region5: #{tpu_custom_call.1} parent=1 // pred_fallthru
      _
    // Predicated region
    $region6: #{tpu_custom_call.1} parent=1 // pred_check
      _
    $region7: #{tpu_custom_call.1} parent=1 // pred_check_branch
      %23 = sbr.rel (0) target = $region9
    $region8: #{tpu_custom_call.1} parent=1 // pred_region
      %s25 = ssub.s32 3072, 3072
      %26 = vsyncadd [#allocation7], %s25
      %s27 = sshll.u32 [#allocation6], 4
      %s28 = int_to_ptr.vmem [resolvable:$true] %s27
      %33 = dma.hbm_to_vmem [thread:$0]  %s1, 3072, %s28, [#allocation7], 192, 192, 12
    $region9: #{tpu_custom_call.1} parent=1 // pred_fallthru
      _
    // Predicated region
    $region10: #{tpu_custom_call.1} parent=1 // pred_check
      _
    $region11: #{tpu_custom_call.1} parent=1 // pred_check_branch
      %35 = sbr.rel (0) target = $region13
    $region12: #{tpu_custom_call.1} parent=1 // pred_region
      %36 = dma.done [#allocation4], 256
    $region13: #{tpu_custom_call.1} parent=1 // pred_fallthru
      _
    // Predicated region
    $region14: #{tpu_custom_call.1} parent=1 // pred_check
      _
    $region15: #{tpu_custom_call.1} parent=1 // pred_check_branch
      %38 = sbr.rel (0) target = $region17
    $region16: #{tpu_custom_call.1} parent=1 // pred_region
      %39 = dma.done [#allocation7], 3072
    $region17: #{tpu_custom_call.1} parent=1 // pred_fallthru
      _
    %p41 = scmp.eq.s32.totalorder 0, 0
    // Predicated region
    $region18: #{tpu_custom_call.1} parent=1 // pred_check
      %p42 = pneg %p41
    $region19: #{tpu_custom_call.1} parent=1 // pred_check_branch
      %44 = sbr.rel (%p42) target = $region21
    $region20: #{tpu_custom_call.1} parent=1 // pred_region
      %45 = vst [vmem:[#allocation2] sm:$0xff] 0.0
      %46 = vst [vmem:[#allocation2 + $0x8] sm:$0xff] 0.0
      %47 = vst [vmem:[#allocation2 + $0x10] sm:$0xff] 0.0
      %48 = vst [vmem:[#allocation2 + $0x18] sm:$0xff] 0.0
      %49 = vst [vmem:[#allocation2 + $0x20] sm:$0xff] 0.0
      %50 = vst [vmem:[#allocation2 + $0x28] sm:$0xff] 0.0
      %51 = vst [vmem:[#allocation2 + $0x30] sm:$0xff] 0.0
      %52 = vst [vmem:[#allocation2 + $0x38] sm:$0xff] 0.0
      %53 = vst [vmem:[#allocation2 + $0x40] sm:$0xff] 0.0
      %54 = vst [vmem:[#allocation2 + $0x48] sm:$0xff] 0.0
      %55 = vst [vmem:[#allocation2 + $0x50] sm:$0xff] 0.0
      %56 = vst [vmem:[#allocation2 + $0x58] sm:$0xff] 0.0
    $region21: #{tpu_custom_call.1} parent=1 // pred_fallthru
      _
    %v57 = vld [vmem:[#allocation2] sm:$0xff]
    %v58 = vld [vmem:[#allocation2 + $0x8] sm:$0xff]
    %v59 = vld [vmem:[#allocation2 + $0x10] sm:$0xff]
    %v60 = vld [vmem:[#allocation2 + $0x18] sm:$0xff]
    %v61 = vld [vmem:[#allocation2 + $0x20] sm:$0xff]
    %v62 = vld [vmem:[#allocation2 + $0x28] sm:$0xff]
    %v63 = vld [vmem:[#allocation2 + $0x30] sm:$0xff]
    %v64 = vld [vmem:[#allocation2 + $0x38] sm:$0xff]
    %v65 = vld [vmem:[#allocation2 + $0x40] sm:$0xff]
    %v66 = vld [vmem:[#allocation2 + $0x48] sm:$0xff]
    %v67 = vld [vmem:[#allocation2 + $0x50] sm:$0xff]
    %v68 = vld [vmem:[#allocation2 + $0x58] sm:$0xff]
    %v69 = vld [vmem:[#allocation3] sm:$0xf]
    %v70 = vld [vmem:[#allocation3 + $0x4] sm:$0xf]
    %v71 = vld [vmem:[#allocation3 + $0x8] sm:$0xf]
    %v72 = vld [vmem:[#allocation3 + $0xc] sm:$0xf]
    %v73 = vld [vmem:[#allocation6] sm:$0xff]
    %v74 = vld [vmem:[#allocation6 + $0x8] sm:$0xf]
    %v75 = vld [vmem:[#allocation6 + $0xc] sm:$0xff]
    %v76 = vld [vmem:[#allocation6 + $0x14] sm:$0xf]
    %v77 = vld [vmem:[#allocation6 + $0x18] sm:$0xff]
    %v78 = vld [vmem:[#allocation6 + $0x20] sm:$0xf]
    %v79 = vld [vmem:[#allocation6 + $0x24] sm:$0xff]
    %v80 = vld [vmem:[#allocation6 + $0x2c] sm:$0xf]
    %v81 = vld [vmem:[#allocation6 + $0x30] sm:$0xff]
    %v82 = vld [vmem:[#allocation6 + $0x38] sm:$0xf]
    %v83 = vld [vmem:[#allocation6 + $0x3c] sm:$0xff]
    %v84 = vld [vmem:[#allocation6 + $0x44] sm:$0xf]
    %v85 = vld [vmem:[#allocation6 + $0x48] sm:$0xff]
    %v86 = vld [vmem:[#allocation6 + $0x50] sm:$0xf]
    %v87 = vld [vmem:[#allocation6 + $0x54] sm:$0xff]
    %v88 = vld [vmem:[#allocation6 + $0x5c] sm:$0xf]
    %v89 = vld [vmem:[#allocation6 + $0x60] sm:$0xff]
    %v90 = vld [vmem:[#allocation6 + $0x68] sm:$0xf]
    %v91 = vld [vmem:[#allocation6 + $0x6c] sm:$0xff]
    %v92 = vld [vmem:[#allocation6 + $0x74] sm:$0xf]
    %v93 = vld [vmem:[#allocation6 + $0x78] sm:$0xff]
    %v94 = vld [vmem:[#allocation6 + $0x80] sm:$0xf]
    %v95 = vld [vmem:[#allocation6 + $0x84] sm:$0xff]
    %v96 = vld [vmem:[#allocation6 + $0x8c] sm:$0xf]
    %v97 = vld [vmem:[#allocation6 + $0x90] sm:$0xff]
    %v98 = vld [vmem:[#allocation6 + $0x98] sm:$0xf]
    %v99 = vld [vmem:[#allocation6 + $0x9c] sm:$0xff]
    %v100 = vld [vmem:[#allocation6 + $0xa4] sm:$0xf]
    %v101 = vld [vmem:[#allocation6 + $0xa8] sm:$0xff]
    %v102 = vld [vmem:[#allocation6 + $0xb0] sm:$0xf]
    %v103 = vld [vmem:[#allocation6 + $0xb4] sm:$0xff]
    %v104 = vld [vmem:[#allocation6 + $0xbc] sm:$0xf]
    %v109 = vunpack.c.l.b16 %v69
    %v110 = vunpack.c.l.b16 %v70
    %v111 = vunpack.c.l.b16 %v71
    %v112 = vunpack.c.l.b16 %v72
    %v113 = vpack.c.b16 %v110, %v109
    %v114 = vpack.c.b16 %v112, %v111
    %v149 = vunpack.c.l.b16 %v73
    %v150 = vunpack.c.h.b16 %v73
    %v151 = vunpack.c.l.b16 %v74
    %v152 = vunpack.c.l.b16 %v75
    %v153 = vunpack.c.h.b16 %v75
    %v154 = vunpack.c.l.b16 %v76
    %v155 = vunpack.c.l.b16 %v77
    %v156 = vunpack.c.h.b16 %v77
    %v157 = vunpack.c.l.b16 %v78
    %v158 = vunpack.c.l.b16 %v79
    %v159 = vunpack.c.h.b16 %v79
    %v160 = vunpack.c.l.b16 %v80
    %v161 = vunpack.c.l.b16 %v81
    %v162 = vunpack.c.h.b16 %v81
    %v163 = vunpack.c.l.b16 %v82
    %v164 = vunpack.c.l.b16 %v83
    %v165 = vunpack.c.h.b16 %v83
    %v166 = vunpack.c.l.b16 %v84
    %v167 = vunpack.c.l.b16 %v85
    %v168 = vunpack.c.h.b16 %v85
    %v169 = vunpack.c.l.b16 %v86
    %v170 = vunpack.c.l.b16 %v87
    %v171 = vunpack.c.h.b16 %v87
    %v172 = vunpack.c.l.b16 %v88
    %v173 = vunpack.c.l.b16 %v89
    %v174 = vunpack.c.h.b16 %v89
    %v175 = vunpack.c.l.b16 %v90
    %v176 = vunpack.c.l.b16 %v91
    %v177 = vunpack.c.h.b16 %v91
    %v178 = vunpack.c.l.b16 %v92
    %v179 = vunpack.c.l.b16 %v93
    %v180 = vunpack.c.h.b16 %v93
    %v181 = vunpack.c.l.b16 %v94
    %v182 = vunpack.c.l.b16 %v95
    %v183 = vunpack.c.h.b16 %v95
    %v184 = vunpack.c.l.b16 %v96
    %v185 = vunpack.c.l.b16 %v97
    %v186 = vunpack.c.h.b16 %v97
    %v187 = vunpack.c.l.b16 %v98
    %v188 = vunpack.c.l.b16 %v99
    %v189 = vunpack.c.h.b16 %v99
    %v190 = vunpack.c.l.b16 %v100
    %v191 = vunpack.c.l.b16 %v101
    %v192 = vunpack.c.h.b16 %v101
    %v193 = vunpack.c.l.b16 %v102
    %v194 = vunpack.c.l.b16 %v103
    %v195 = vunpack.c.h.b16 %v103
    %v196 = vunpack.c.l.b16 %v104
    %v197 = vpack.c.b16 %v152, %v149
    %v198 = vpack.c.b16 %v153, %v150
    %v199 = vpack.c.b16 %v154, %v151
    %v200 = vpack.c.b16 %v158, %v155
    %v201 = vpack.c.b16 %v159, %v156
    %v202 = vpack.c.b16 %v160, %v157
    %v203 = vpack.c.b16 %v164, %v161
    %v204 = vpack.c.b16 %v165, %v162
    %v205 = vpack.c.b16 %v166, %v163
    %v206 = vpack.c.b16 %v170, %v167
    %v207 = vpack.c.b16 %v171, %v168
    %v208 = vpack.c.b16 %v172, %v169
    %v209 = vpack.c.b16 %v176, %v173
    %v210 = vpack.c.b16 %v177, %v174
    %v211 = vpack.c.b16 %v178, %v175
    %v212 = vpack.c.b16 %v182, %v179
    %v213 = vpack.c.b16 %v183, %v180
    %v214 = vpack.c.b16 %v184, %v181
    %v215 = vpack.c.b16 %v188, %v185
    %v216 = vpack.c.b16 %v189, %v186
    %v217 = vpack.c.b16 %v190, %v187
    %v218 = vpack.c.b16 %v194, %v191
    %v219 = vpack.c.b16 %v195, %v192
    %v220 = vpack.c.b16 %v196, %v193
    %245 = vmatprep.subr.bf16.mxu0 %v198
    %246 = vmatpush1.bf16.msra.mxu0 %v197
    %247 = vmatprep.subr.bf16.mxu0 %v201
    %248 = vmatpush1.bf16.msra.mxu0 %v200
    %249 = vmatprep.subr.bf16.mxu0 %v204
    %250 = vmatpush1.bf16.msra.mxu0 %v203
    %251 = vmatprep.subr.bf16.mxu0 %v207
    %252 = vmatpush1.bf16.msra.mxu0 %v206
    %253 = vmatprep.subr.bf16.mxu0 %v210
    %254 = vmatpush1.bf16.msra.mxu0 %v209
    %255 = vmatprep.subr.bf16.mxu0 %v213
    %256 = vmatpush1.bf16.msra.mxu0 %v212
    %257 = vmatprep.subr.bf16.mxu0 %v216
    %258 = vmatpush1.bf16.msra.mxu0 %v215
    %259 = vmatprep.subr.bf16.mxu0 %v219
    %260 = vmatpush1.bf16.msra.mxu0 %v218
    %261 = vmatprep.subr.bf16.mxu0 0
    %262 = vmatpush1.bf16.msra.mxu0 0
    %263 = vmatprep.subr.bf16.mxu0 0
    %264 = vmatpush1.bf16.msra.mxu0 0
    %265 = vmatprep.subr.bf16.mxu0 0
    %266 = vmatpush1.bf16.msra.mxu0 0
    %267 = vmatprep.subr.bf16.mxu0 0
    %268 = vmatpush1.bf16.msra.mxu0 0
    %269 = vmatprep.subr.bf16.mxu0 0
    %270 = vmatpush1.bf16.msra.mxu0 0
    %271 = vmatprep.subr.bf16.mxu0 0
    %272 = vmatpush1.bf16.msra.mxu0 0
    %273 = vmatprep.subr.bf16.mxu0 0
    %274 = vmatpush1.bf16.msra.mxu0 0
    %275 = vmatprep.subr.bf16.mxu0 0
    %276 = vmatpush1.bf16.msra.mxu0 0
    %277 = vmatprep.mubr.bf16.mxu0 0
    %278 = vmatmul.mubr.bf16.gmra.mrb[0].mxu0 %v113
    %v279 = vpop.f32.mrb[0].mxu0
    %v280 = vadd.f32 0.0, %v279
    %v281 = vpop.f32.mrb[0].mxu0
    %v282 = vadd.f32 0.0, %v281
    %v283 = vpop.f32.mrb[0].mxu0
    %v284 = vadd.f32 0.0, %v283
    %v285 = vpop.f32.mrb[0].mxu0
    %v286 = vadd.f32 0.0, %v285
    %287 = vmatprep.mubr.bf16.mxu0 0
    %288 = vmatmul.mubr.bf16.gmra.mrb[0].mxu0 %v114
    %v289 = vpop.f32.mrb[0].mxu0
    %v290 = vadd.f32 0.0, %v289
    %v291 = vpop.f32.mrb[0].mxu0
    %v292 = vadd.f32 0.0, %v291
    %v293 = vpop.f32.mrb[0].mxu0
    %v294 = vadd.f32 0.0, %v293
    %v295 = vpop.f32.mrb[0].mxu0
    %v296 = vadd.f32 0.0, %v295
    %297 = vdwg.mxu0
    %298 = vmatprep.subr.bf16.mxu0 0
    %299 = vmatpush1.bf16.msra.mxu0 %v199
    %300 = vmatprep.subr.bf16.mxu0 0
    %301 = vmatpush1.bf16.msra.mxu0 %v202
    %302 = vmatprep.subr.bf16.mxu0 0
    %303 = vmatpush1.bf16.msra.mxu0 %v205
    %304 = vmatprep.subr.bf16.mxu0 0
    %305 = vmatpush1.bf16.msra.mxu0 %v208
    %306 = vmatprep.subr.bf16.mxu0 0
    %307 = vmatpush1.bf16.msra.mxu0 %v211
    %308 = vmatprep.subr.bf16.mxu0 0
    %309 = vmatpush1.bf16.msra.mxu0 %v214
    %310 = vmatprep.subr.bf16.mxu0 0
    %311 = vmatpush1.bf16.msra.mxu0 %v217
    %312 = vmatprep.subr.bf16.mxu0 0
    %313 = vmatpush1.bf16.msra.mxu0 %v220
    %314 = vmatprep.subr.bf16.mxu0 0
    %315 = vmatpush1.bf16.msra.mxu0 0
    %316 = vmatprep.subr.bf16.mxu0 0
    %317 = vmatpush1.bf16.msra.mxu0 0
    %318 = vmatprep.subr.bf16.mxu0 0
    %319 = vmatpush1.bf16.msra.mxu0 0
    %320 = vmatprep.subr.bf16.mxu0 0
    %321 = vmatpush1.bf16.msra.mxu0 0
    %322 = vmatprep.subr.bf16.mxu0 0
    %323 = vmatpush1.bf16.msra.mxu0 0
    %324 = vmatprep.subr.bf16.mxu0 0
    %325 = vmatpush1.bf16.msra.mxu0 0
    %326 = vmatprep.subr.bf16.mxu0 0
    %327 = vmatpush1.bf16.msra.mxu0 0
    %328 = vmatprep.subr.bf16.mxu0 0
    %329 = vmatpush1.bf16.msra.mxu0 0
    %330 = vmatprep.mubr.bf16.mxu0 0
    %331 = vmatmul.mubr.bf16.gmra.mrb[0].mxu0 %v113
    %v332 = vpop.f32.mrb[0].mxu0
    %v333 = vadd.f32 0.0, %v332
    %v334 = vpop.f32.mrb[0].mxu0
    %v335 = vpop.f32.mrb[0].mxu0
    %v336 = vadd.f32 0.0, %v335
    %v337 = vpop.f32.mrb[0].mxu0
    %338 = vmatprep.mubr.bf16.mxu0 0
    %339 = vmatmul.mubr.bf16.gmra.mrb[0].mxu0 %v114
    %v340 = vpop.f32.mrb[0].mxu0
    %v341 = vadd.f32 0.0, %v340
    %v342 = vpop.f32.mrb[0].mxu0
    %v343 = vpop.f32.mrb[0].mxu0
    %v344 = vadd.f32 0.0, %v343
    %v345 = vpop.f32.mrb[0].mxu0
    %346 = vdwg.mxu0
    %v347 = vadd.f32 %v57, %v280
    %v348 = vadd.f32 %v58, %v282
    %v349 = vadd.f32 %v59, %v333
    %v350 = vadd.f32 %v60, %v284
    %v351 = vadd.f32 %v61, %v286
    %v352 = vadd.f32 %v62, %v336
    %v353 = vadd.f32 %v63, %v290
    %v354 = vadd.f32 %v64, %v292
    %v355 = vadd.f32 %v65, %v341
    %v356 = vadd.f32 %v66, %v294
    %v357 = vadd.f32 %v67, %v296
    %v358 = vadd.f32 %v68, %v344
    %359 = vst [vmem:[#allocation2] sm:$0xff] %v347
    %360 = vst [vmem:[#allocation2 + $0x8] sm:$0xff] %v348
    %361 = vst [vmem:[#allocation2 + $0x10] sm:$0xff] %v349
    %362 = vst [vmem:[#allocation2 + $0x18] sm:$0xff] %v350
    %363 = vst [vmem:[#allocation2 + $0x20] sm:$0xff] %v351
    %364 = vst [vmem:[#allocation2 + $0x28] sm:$0xff] %v352
    %365 = vst [vmem:[#allocation2 + $0x30] sm:$0xff] %v353
    %366 = vst [vmem:[#allocation2 + $0x38] sm:$0xff] %v354
    %367 = vst [vmem:[#allocation2 + $0x40] sm:$0xff] %v355
    %368 = vst [vmem:[#allocation2 + $0x48] sm:$0xff] %v356
    %369 = vst [vmem:[#allocation2 + $0x50] sm:$0xff] %v357
    %370 = vst [vmem:[#allocation2 + $0x58] sm:$0xff] %v358
    // Predicated region
    $region22: #{tpu_custom_call.1} parent=1 // pred_check
      %p371 = pneg %p41
    $region23: #{tpu_custom_call.1} parent=1 // pred_check_branch
      %373 = sbr.rel (%p371) target = $region25
    $region24: #{tpu_custom_call.1} parent=1 // pred_region
      %v374 = vld [vmem:[#allocation2] sm:$0xff]
      %v375 = vld [vmem:[#allocation2 + $0x8] sm:$0xff]
      %v376 = vld [vmem:[#allocation2 + $0x10] sm:$0xff]
      %v377 = vld [vmem:[#allocation2 + $0x18] sm:$0xff]
      %v378 = vld [vmem:[#allocation2 + $0x20] sm:$0xff]
      %v379 = vld [vmem:[#allocation2 + $0x28] sm:$0xff]
      %v380 = vld [vmem:[#allocation2 + $0x30] sm:$0xff]
      %v381 = vld [vmem:[#allocation2 + $0x38] sm:$0xff]
      %v382 = vld [vmem:[#allocation2 + $0x40] sm:$0xff]
      %v383 = vld [vmem:[#allocation2 + $0x48] sm:$0xff]
      %v384 = vld [vmem:[#allocation2 + $0x50] sm:$0xff]
      %v385 = vld [vmem:[#allocation2 + $0x58] sm:$0xff]
      %v386 = vpack.c.bf16 %v377, %v374
      %v387 = vpack.c.bf16 %v378, %v375
      %v388 = vpack.c.bf16 %v379, %v376
      %v389 = vpack.c.bf16 %v383, %v380
      %v390 = vpack.c.bf16 %v384, %v381
      %v391 = vpack.c.bf16 %v385, %v382
      %v398 = vunpack.c.l.b16 %v386
      %v399 = vunpack.c.l.b16 %v387
      %v400 = vunpack.c.l.b16 %v388
      %v401 = vunpack.c.h.b16 %v386
      %v402 = vunpack.c.h.b16 %v387
      %v403 = vunpack.c.h.b16 %v388
      %v404 = vunpack.c.l.b16 %v389
      %v405 = vunpack.c.l.b16 %v390
      %v406 = vunpack.c.l.b16 %v391
      %v407 = vunpack.c.h.b16 %v389
      %v408 = vunpack.c.h.b16 %v390
      %v409 = vunpack.c.h.b16 %v391
      %v410 = vpack.c.b16 %v399, %v398
      %v411 = vpack.c.b16 %v400, %v400
      %v412 = vpack.c.b16 %v402, %v401
      %v413 = vpack.c.b16 %v403, %v403
      %v414 = vpack.c.b16 %v405, %v404
      %v415 = vpack.c.b16 %v406, %v406
      %v416 = vpack.c.b16 %v408, %v407
      %v417 = vpack.c.b16 %v409, %v409
      %426 = vst [vmem:[#allocation8] sm:$0xff] %v410
      %427 = vst [vmem:[#allocation8 + $0x8] sm:$0xf] %v411
      %428 = vst [vmem:[#allocation8 + $0xc] sm:$0xff] %v412
      %429 = vst [vmem:[#allocation8 + $0x14] sm:$0xf] %v413
      %430 = vst [vmem:[#allocation8 + $0x18] sm:$0xff] %v414
      %431 = vst [vmem:[#allocation8 + $0x20] sm:$0xf] %v415
      %432 = vst [vmem:[#allocation8 + $0x24] sm:$0xff] %v416
      %433 = vst [vmem:[#allocation8 + $0x2c] sm:$0xf] %v417
    $region25: #{tpu_custom_call.1} parent=1 // pred_fallthru
      _
    // Predicated region
    $region26: #{tpu_custom_call.1} parent=1 // pred_check
      _
    $region27: #{tpu_custom_call.1} parent=1 // pred_check_branch
      %435 = sbr.rel (0) target = $region29
    $region28: #{tpu_custom_call.1} parent=1 // pred_region
      %s437 = ssub.s32 768, 768
      %438 = vsyncadd [#allocation5], %s437
      %s439 = sshll.u32 [#allocation8], 4
      %s440 = int_to_ptr.vmem [resolvable:$true] %s439
      %445 = dma.vmem_to_hbm [thread:$0]  %s440, 768, %s2, [#allocation5], 192, 192, 12
    $region29: #{tpu_custom_call.1} parent=1 // pred_fallthru
      _
    // Predicated region
    $region30: #{tpu_custom_call.1} parent=1 // pred_check
      _
    $region31: #{tpu_custom_call.1} parent=1 // pred_check_branch
      %447 = sbr.rel (0) target = $region33
    $region32: #{tpu_custom_call.1} parent=1 // pred_region
      %448 = dma.done [#allocation5], 768
    $region33: #{tpu_custom_call.1} parent=1 // pred_fallthru
      _
    %449 = vsyncpa [#allocation4], 1
    %450 = vsyncpa [#allocation7], 1
    %451 = vsyncpa [#allocation5], 1

</llo_original>
